<compile_context>
chip_gen: v7x
topology: tpu7x:2x2x1
jax: 0.10.0
libtpu: 0.0.40
codegen_flags: <defaults>
</compile_context>

<pallas_src>
import functools

import jax
import jax.numpy as jnp
from jax.experimental import pallas as pl
from jax.experimental.pallas import tpu as pltpu


def _add_layernorm_kernel(x_ref, s_ref, w_ref, b_ref, o_ref, *, eps):
    # Residual add; all statistics in f32.
    y = x_ref[...].astype(jnp.float32) + s_ref[...].astype(jnp.float32)
    w = w_ref[...].astype(jnp.float32)          # (1, F), broadcast over rows
    b = b_ref[...].astype(jnp.float32)          # (1, F)

    n = y.shape[-1]
    # Single-pass statistics: both row-sums are independent (back-to-back on
    # the XLU); f32 accumulation keeps cancellation error small at these n.
    s1 = jnp.sum(y, axis=-1, keepdims=True)
    s2 = jnp.sum(y * y, axis=-1, keepdims=True)
    inv_n = jnp.float32(1.0 / n)
    mean = s1 * inv_n
    # torch.std default is unbiased (Bessel's correction, divide by N-1).
    var = (s2 - s1 * mean) * jnp.float32(1.0 / (n - 1))
    var = jnp.maximum(var, 0.0)                 # guard tiny negative rounding
    std = jnp.sqrt(var)

    # One full-precision reciprocal per row (EUP slot, effectively free in a
    # memory-bound kernel) instead of a per-element divide.
    inv = pl.reciprocal(std + eps, approx=False)

    o_ref[...] = ((y - mean) * inv * w + b).astype(o_ref.dtype)


def _round_up(x, m):
    return ((x + m - 1) // m) * m


def _choose_tile_rows(rows, features, itemsize):
    # VMEM budget ~16 MiB for the row-tiled arrays: 3 tiles (x, sub, out),
    # each double-buffered by the pipeline.  Weight/bias are a single
    # resident (1, F) block and are negligible.  This stays comfortably
    # under the 32 MiB scoped limit requested below (v7x physical: 64 MiB).
    budget = 16 * 1024 * 1024
    bytes_per_row = 3 * 2 * features * itemsize
    cap = max(8, (budget // max(bytes_per_row, 1)) // 8 * 8)
    return int(min(2048, cap, _round_up(rows, 8)))


def fused_add_layer_norm(x, sub, weight, bias, *, eps=1e-6, tile_rows=None):
    """LayerNorm(x + sub) with torch LayerNorm-variant semantics.

    x, sub: [..., features]; weight/bias: [features].
    """
    orig_shape = x.shape
    features = orig_shape[-1]
    rows = 1
    for d in orig_shape[:-1]:
        rows *= d

    x2d = x.reshape(rows, features)
    s2d = sub.reshape(rows, features)
    w2d = weight.reshape(1, features)
    b2d = bias.reshape(1, features)

    itemsize = jnp.dtype(x.dtype).itemsize
    if tile_rows is None:
        tile_rows = _choose_tile_rows(rows, features, itemsize)

    grid = (pl.cdiv(rows, tile_rows),)

    cost = pl.CostEstimate(
        flops=10 * rows * features,
        transcendentals=2 * rows,
        bytes_accessed=3 * rows * features * itemsize + 2 * features * itemsize,
    )

    out = pl.pallas_call(
        functools.partial(_add_layernorm_kernel, eps=eps),
        out_shape=jax.ShapeDtypeStruct((rows, features), x.dtype),
        grid_spec=pltpu.PrefetchScalarGridSpec(
            num_scalar_prefetch=0,
            grid=grid,
            in_specs=[
                pl.BlockSpec((tile_rows, features), lambda i: (i, 0)),
                pl.BlockSpec((tile_rows, features), lambda i: (i, 0)),
                # Constant block index -> stays resident in VMEM, no re-DMA.
                pl.BlockSpec((1, features), lambda i: (0, 0)),
                pl.BlockSpec((1, features), lambda i: (0, 0)),
            ],
            out_specs=pl.BlockSpec((tile_rows, features), lambda i: (i, 0)),
        ),
        compiler_params=pltpu.CompilerParams(
            dimension_semantics=("parallel",),
            vmem_limit_bytes=32 * 1024 * 1024,
        ),
        cost_estimate=cost,
    )(x2d, s2d, w2d, b2d)

    return out.reshape(orig_shape)


def sublayer_connection(x, sublayer, weight, bias, *, eps=1e-6, tile_rows=None):
    """SublayerConnection.forward: layer_norm(x + dropout(sublayer(x)))."""
    sub_out = sublayer(x)
    # TODO(synk): training-mode dropout (torch RNG) has no faithful Pallas
    # equivalent; inference-mode dropout is the identity, applied here.
    return fused_add_layer_norm(x, sub_out, weight, bias, eps=eps,
                                tile_rows=tile_rows)


def _reference(x, sub, weight, bias, eps):
    y = x + sub
    n = y.shape[-1]
    mean = jnp.mean(y, axis=-1, keepdims=True)
    var = jnp.sum((y - mean) ** 2, axis=-1, keepdims=True) / (n - 1)
    return weight * (y - mean) / (jnp.sqrt(var) + eps) + bias


if __name__ == "__main__":
    key = jax.random.PRNGKey(0)
    eps = 1e-6

    # Deterministic parameter init per the nn.Module __init__: ones / zeros.
    def run_case(shape, subkey):
        features = shape[-1]
        x = jax.random.normal(subkey, shape, dtype=jnp.float32)
        weight = jnp.ones((features,), dtype=jnp.float32)
        bias = jnp.zeros((features,), dtype=jnp.float32)
        sublayer = jnp.tanh  # stand-in sublayer callable
        out = sublayer_connection(x, sublayer, weight, bias, eps=eps)
        out = jax.block_until_ready(out)
        ref = _reference(x, sublayer(x), weight, bias, eps)
        assert jnp.allclose(out, ref, atol=2e-5, rtol=2e-5), shape

    k1, k2 = jax.random.split(key)
    # batch=2, seq=8, hidden=128 (lane-dense feature dim).
    run_case((2, 8, 128), k1)
    # Non-divisible row count + non-128 feature dim exercises the partial
    # last block (no padding copies are made).
    run_case((2, 5, 96), k2)

    print("KERNEL_OK")
</pallas_src>

<mosaic_0001>
module attributes {stable_mosaic.version = 11 : i64} {
  func.func @_add_layernorm_kernel(%arg0: i32, %arg1: memref<16x128xf32, #tpu.memory_space<vmem>>, %arg2: memref<16x128xf32, #tpu.memory_space<vmem>>, %arg3: memref<1x128xf32, #tpu.memory_space<vmem>>, %arg4: memref<1x128xf32, #tpu.memory_space<vmem>>, %arg5: memref<16x128xf32, #tpu.memory_space<vmem>>) attributes {dimension_semantics = [#tpu.dimension_semantics<parallel>], iteration_bounds = array<i64: 1>, scalar_prefetch = 0 : i64, scratch_operands = 0 : i64, tpu.core_type = #tpu.core_type<tc>, window_params = [{transform_indices = @transform_0, window_bounds = array<i64: 16, 128>}, {transform_indices = @transform_1, window_bounds = array<i64: 16, 128>}, {pipeline_mode = #tpu.pipeline_mode<synchronous>, transform_indices = @transform_2, window_bounds = array<i64: 1, 128>}, {pipeline_mode = #tpu.pipeline_mode<synchronous>, transform_indices = @transform_3, window_bounds = array<i64: 1, 128>}, {transform_indices = @transform_4, window_bounds = array<i64: 16, 128>}]} {
    %c0 = arith.constant 0 : index
    %c0_0 = arith.constant 0 : index
    %0 = vector.load %arg1[%c0, %c0_0] : memref<16x128xf32, #tpu.memory_space<vmem>>, vector<16x128xf32>
    %c0_1 = arith.constant 0 : index
    %c0_2 = arith.constant 0 : index
    %1 = vector.load %arg2[%c0_1, %c0_2] : memref<16x128xf32, #tpu.memory_space<vmem>>, vector<16x128xf32>
    %2 = arith.addf %0, %1 : vector<16x128xf32>
    %c0_3 = arith.constant 0 : index
    %c0_4 = arith.constant 0 : index
    %3 = vector.load %arg3[%c0_3, %c0_4] : memref<1x128xf32, #tpu.memory_space<vmem>>, vector<1x128xf32>
    %c0_5 = arith.constant 0 : index
    %c0_6 = arith.constant 0 : index
    %4 = vector.load %arg4[%c0_5, %c0_6] : memref<1x128xf32, #tpu.memory_space<vmem>>, vector<1x128xf32>
    %cst = arith.constant dense<0.000000e+00> : vector<16xf32>
    %5 = vector.multi_reduction <add>, %2, %cst [1] : vector<16x128xf32> to vector<16xf32>
    %6 = vector.shape_cast %5 : vector<16xf32> to vector<16x1xf32>
    %7 = arith.mulf %2, %2 : vector<16x128xf32>
    %cst_7 = arith.constant dense<0.000000e+00> : vector<16xf32>
    %8 = vector.multi_reduction <add>, %7, %cst_7 [1] : vector<16x128xf32> to vector<16xf32>
    %9 = vector.shape_cast %8 : vector<16xf32> to vector<16x1xf32>
    %cst_8 = arith.constant 7.812500e-03 : f32
    %10 = vector.broadcast %cst_8 : f32 to vector<16x1xf32>
    %11 = arith.mulf %6, %10 : vector<16x1xf32>
    %12 = arith.mulf %6, %11 : vector<16x1xf32>
    %13 = arith.subf %9, %12 : vector<16x1xf32>
    %cst_9 = arith.constant 0.00787401571 : f32
    %14 = vector.broadcast %cst_9 : f32 to vector<16x1xf32>
    %15 = arith.mulf %13, %14 : vector<16x1xf32>
    %cst_10 = arith.constant 0.000000e+00 : f32
    %16 = vector.broadcast %cst_10 : f32 to vector<16x1xf32>
    %17 = arith.maximumf %15, %16 : vector<16x1xf32>
    %18 = math.sqrt %17 : vector<16x1xf32>
    %cst_11 = arith.constant 9.99999997E-7 : f32
    %19 = vector.broadcast %cst_11 : f32 to vector<16x1xf32>
    %20 = arith.addf %18, %19 : vector<16x1xf32>
    %21 = tpu.reciprocal %20 : vector<16x1xf32> -> vector<16x1xf32>
    %22 = vector.broadcast %11 : vector<16x1xf32> to vector<16x128xf32>
    %23 = arith.subf %2, %22 : vector<16x128xf32>
    %24 = vector.broadcast %21 : vector<16x1xf32> to vector<16x128xf32>
    %25 = arith.mulf %23, %24 : vector<16x128xf32>
    %26 = vector.broadcast %3 : vector<1x128xf32> to vector<16x128xf32>
    %27 = arith.mulf %25, %26 : vector<16x128xf32>
    %28 = vector.broadcast %4 : vector<1x128xf32> to vector<16x128xf32>
    %29 = arith.addf %27, %28 : vector<16x128xf32>
    %c0_12 = arith.constant 0 : index
    %c0_13 = arith.constant 0 : index
    %30 = vector.load %arg5[%c0_12, %c0_13] : memref<16x128xf32, #tpu.memory_space<vmem>>, vector<16x128xf32>
    tpu.vector_store %arg5[%c0_12, %c0_13], %29 {strides = array<i32>} : memref<16x128xf32, #tpu.memory_space<vmem>>, vector<16x128xf32>,
    return
  }
  func.func @transform_0(%arg0: i32) -> (i32, i32) {
    %c0_i32 = arith.constant 0 : i32
    %c0_i32_0 = arith.constant 0 : i32
    return %arg0, %c0_i32 : i32, i32
  }
  func.func @transform_1(%arg0: i32) -> (i32, i32) {
    %c0_i32 = arith.constant 0 : i32
    %c0_i32_0 = arith.constant 0 : i32
    return %arg0, %c0_i32 : i32, i32
  }
  func.func @transform_2(%arg0: i32) -> (i32, i32) {
    %c0_i32 = arith.constant 0 : i32
    %c0_i32_0 = arith.constant 0 : i32
    %c0_i32_1 = arith.constant 0 : i32
    return %c0_i32, %c0_i32_0 : i32, i32
  }
  func.func @transform_3(%arg0: i32) -> (i32, i32) {
    %c0_i32 = arith.constant 0 : i32
    %c0_i32_0 = arith.constant 0 : i32
    %c0_i32_1 = arith.constant 0 : i32
    return %c0_i32, %c0_i32_0 : i32, i32
  }
  func.func @transform_4(%arg0: i32) -> (i32, i32) {
    %c0_i32 = arith.constant 0 : i32
    %c0_i32_0 = arith.constant 0 : i32
    return %arg0, %c0_i32 : i32, i32
  }
}

</mosaic_0001>

<llo_original>
// kernel: tpu_custom_call.1
$region0: #{tpu_custom_call.1}
  #allocation0 [shape = 'u32[]', space=smem, size = 0x4, offset = 0x4, fixed_abs, tag = 'smem constant byte address 0x4 - core index']
  #allocation1 [shape = 'u32[144,128]{1,0:T(1,128)}', space=vmem, size = 0x12000, scoped, tag = 'internal scratch']
  %s0 = inlined_call_operand.hbm [shape: f32[16,128], index: 0, kind: input, shape index: {}]
  %s1 = inlined_call_operand.hbm [shape: f32[16,128], index: 1, kind: input, shape index: {}]
  %s2 = inlined_call_operand.vmem [shape: f32[1,128], index: 2, kind: input, shape index: {}]
  %s3 = inlined_call_operand.vmem [shape: f32[1,128], index: 3, kind: input, shape index: {}]
  %s4 = inlined_call_operand.hbm [shape: f32[16,128], index: 4, kind: output, shape index: {}]
  %s5 = sld [smem:[#allocation0]]
  $region34: #{tpu_custom_call.1} parent=0
    _
  %s7 = ssub.s32 1, %s5
  %s8 = scalar_select 0, %s7, %s5
  $region1: #{tpu_custom_call.1} parent=0
    #allocation2 [shape = 'u8[8192]{0}', space=vmem, size = 0x2000, scoped, tag = 'input window, operand 0, single buffered']
    #allocation3 [shape = 's32[1]{0}', space=sflag, size = 0x4, scoped, tag = 'scoped memory for tpu_custom_call.1']
    #allocation4 [shape = 's32[1]{0}', space=sflag, size = 0x4, scoped, tag = 'scoped memory for tpu_custom_call.1']
    #allocation5 [shape = 'u8[8192]{0}', space=vmem, size = 0x2000, scoped, tag = 'input window, operand 1, single buffered']
    #allocation6 [shape = 's32[1]{0}', space=sflag, size = 0x4, scoped, tag = 'scoped memory for tpu_custom_call.1']
    #allocation7 [shape = 'u8[8192]{0}', space=vmem, size = 0x2000, scoped, tag = 'output window, operand 0, single buffered']
    %9 = vsyncpa [#allocation3], 0
    %10 = vsyncpa [#allocation6], 0
    %11 = vsyncpa [#allocation4], 0
    // Predicated region
    $region2: #{tpu_custom_call.1} parent=1 // pred_check
      _
    $region3: #{tpu_custom_call.1} parent=1 // pred_check_branch
      %13 = sbr.rel (0) target = $region5
    $region4: #{tpu_custom_call.1} parent=1 // pred_region
      %s15 = ssub.s32 256, 256
      %16 = vsyncadd [#allocation3], %s15
      %s17 = sshll.u32 [#allocation2], 4
      %s18 = int_to_ptr.vmem [resolvable:$true] %s17
      %23 = dma.hbm_to_vmem [thread:$0]  %s0, 256, %s18, [#allocation3], 128, 128, 8
    $region5: #{tpu_custom_call.1} parent=1 // pred_fallthru
      _
    // Predicated region
    $region6: #{tpu_custom_call.1} parent=1 // pred_check
      _
    $region7: #{tpu_custom_call.1} parent=1 // pred_check_branch
      %25 = sbr.rel (0) target = $region9
    $region8: #{tpu_custom_call.1} parent=1 // pred_region
      %s27 = ssub.s32 256, 256
      %28 = vsyncadd [#allocation6], %s27
      %s29 = sshll.u32 [#allocation5], 4
      %s30 = int_to_ptr.vmem [resolvable:$true] %s29
      %35 = dma.hbm_to_vmem [thread:$0]  %s1, 256, %s30, [#allocation6], 128, 128, 8
    $region9: #{tpu_custom_call.1} parent=1 // pred_fallthru
      _
    // Predicated region
    $region10: #{tpu_custom_call.1} parent=1 // pred_check
      _
    $region11: #{tpu_custom_call.1} parent=1 // pred_check_branch
      %37 = sbr.rel (0) target = $region13
    $region12: #{tpu_custom_call.1} parent=1 // pred_region
      _
    $region13: #{tpu_custom_call.1} parent=1 // pred_fallthru
      _
    // Predicated region
    $region14: #{tpu_custom_call.1} parent=1 // pred_check
      _
    $region15: #{tpu_custom_call.1} parent=1 // pred_check_branch
      %39 = sbr.rel (0) target = $region17
    $region16: #{tpu_custom_call.1} parent=1 // pred_region
      _
    $region17: #{tpu_custom_call.1} parent=1 // pred_fallthru
      _
    // Predicated region
    $region18: #{tpu_custom_call.1} parent=1 // pred_check
      _
    $region19: #{tpu_custom_call.1} parent=1 // pred_check_branch
      %41 = sbr.rel (0) target = $region21
    $region20: #{tpu_custom_call.1} parent=1 // pred_region
      %42 = dma.done [#allocation3], 256
    $region21: #{tpu_custom_call.1} parent=1 // pred_fallthru
      _
    // Predicated region
    $region22: #{tpu_custom_call.1} parent=1 // pred_check
      _
    $region23: #{tpu_custom_call.1} parent=1 // pred_check_branch
      %44 = sbr.rel (0) target = $region25
    $region24: #{tpu_custom_call.1} parent=1 // pred_region
      %45 = dma.done [#allocation6], 256
    $region25: #{tpu_custom_call.1} parent=1 // pred_fallthru
      _
    %v46 = vld [vmem:[#allocation2] sm:$0xff]
    %v47 = vld [vmem:[#allocation2 + $0x8] sm:$0xff]
    %v48 = vld [vmem:[#allocation5] sm:$0xff]
    %v49 = vld [vmem:[#allocation5 + $0x8] sm:$0xff]
    %v50 = vadd.f32 %v46, %v48
    %v51 = vadd.f32 %v47, %v49
    %v52 = vld [vmem:[%s2] sm:$0x1]
    %v53 = vld [vmem:[%s3] sm:$0x1]
    %54 = vadd.xlane.f32.xlu0 %v50
    %v55 = vpop.xlane.xlu0 %54
    %56 = vadd.xlane.f32.xlu0 %v51
    %v57 = vpop.xlane.xlu0 %56
    %v58 = vmul.f32 %v50, %v50
    %v59 = vmul.f32 %v51, %v51
    %60 = vadd.xlane.f32.xlu0 %v58
    %v61 = vpop.xlane.xlu0 %60
    %62 = vadd.xlane.f32.xlu0 %v59
    %v63 = vpop.xlane.xlu0 %62
    %v64 = vmul.f32 %v55, 0.0078125
    %v65 = vmul.f32 %v57, 0.0078125
    %v66 = vmul.f32 %v55, %v64
    %v67 = vmul.f32 %v57, %v65
    %v68 = vsub.f32 %v61, %v66
    %v69 = vsub.f32 %v63, %v67
    %v70 = vmul.f32 %v68, 0.007874016
    %v71 = vmul.f32 %v69, 0.007874016
    %v72 = vmax.f32 %v70, 0.0
    %v73 = vmax.f32 %v71, 0.0
    %v74 = vrsqrt.pop %v72
    %v75 = vmul.f32 %v72, %v74
    %vm76 = vcmp.eq.f32.partialorder %v72, inf
    %v77 = vsel %vm76, %v72, %v75
    %vm78 = vcmp.eq.f32.partialorder %v72, 0.0
    %v79 = vand.u32 %v72, 2147483648
    %v80 = vsel %vm78, %v79, %v77
    %v81 = vrsqrt.pop %v73
    %v82 = vmul.f32 %v73, %v81
    %vm83 = vcmp.eq.f32.partialorder %v73, inf
    %v84 = vsel %vm83, %v73, %v82
    %vm85 = vcmp.eq.f32.partialorder %v73, 0.0
    %v86 = vand.u32 %v73, 2147483648
    %v87 = vsel %vm85, %v86, %v84
    %v88 = vadd.f32 %v80, 1e-06
    %v89 = vadd.f32 %v87, 1e-06
    %v90 = vrcp.pop %v88
    %v91 = vrcp.pop %v89
    %v92 = vsub.f32 %v50, %v64
    %v93 = vsub.f32 %v51, %v65
    %v94 = vmul.f32 %v92, %v90
    %v95 = vmul.f32 %v93, %v91
    %v97 = vlaneseq
    %v98 = vshrl.u32 %v97, 7
    %v99 = vsub.s32 0, %v98
    %v100 = vrot.slane %v52, %v99
    %v102 = vmul.f32 %v94, %v100
    %v103 = vmul.f32 %v95, %v100
    %v105 = vlaneseq
    %v106 = vshrl.u32 %v105, 7
    %v107 = vsub.s32 0, %v106
    %v108 = vrot.slane %v53, %v107
    %v110 = vadd.f32 %v102, %v108
    %v111 = vadd.f32 %v103, %v108
    %112 = vst [vmem:[#allocation7] sm:$0xff] %v110
    %113 = vst [vmem:[#allocation7 + $0x8] sm:$0xff] %v111
    // Predicated region
    $region26: #{tpu_custom_call.1} parent=1 // pred_check
      _
    $region27: #{tpu_custom_call.1} parent=1 // pred_check_branch
      %115 = sbr.rel (0) target = $region29
    $region28: #{tpu_custom_call.1} parent=1 // pred_region
      %s117 = ssub.s32 256, 256
      %118 = vsyncadd [#allocation4], %s117
      %s119 = sshll.u32 [#allocation7], 4
      %s120 = int_to_ptr.vmem [resolvable:$true] %s119
      %125 = dma.vmem_to_hbm [thread:$0]  %s120, 256, %s4, [#allocation4], 128, 128, 8
    $region29: #{tpu_custom_call.1} parent=1 // pred_fallthru
      _
    // Predicated region
    $region30: #{tpu_custom_call.1} parent=1 // pred_check
      _
    $region31: #{tpu_custom_call.1} parent=1 // pred_check_branch
      %127 = sbr.rel (0) target = $region33
    $region32: #{tpu_custom_call.1} parent=1 // pred_region
      %128 = dma.done [#allocation4], 256
    $region33: #{tpu_custom_call.1} parent=1 // pred_fallthru
      _
    %129 = vsyncpa [#allocation3], 1
    %130 = vsyncpa [#allocation6], 1
    %131 = vsyncpa [#allocation4], 1

</llo_original>
